<compile_context>
chip_gen: v7x
topology: tpu7x:2x2x1
jax: 0.10.0
libtpu: 0.0.40
codegen_flags: <defaults>
</compile_context>

<pallas_src>
import jax
import jax.numpy as jnp
from jax.experimental import pallas as pl
from jax.experimental.pallas import tpu as pltpu


def readout_kernel(x_ref, w_co_ref, b_co_ref, w_o1_ref, acc_ref):
    """One (batch-group, token-tile) grid step.

    x_ref:    (TB, TN, C)  bf16/f32 activations
    w_co_ref: (C, Rp)      bf16/f32 first-layer weight (R zero-padded to 128 lanes)
    b_co_ref: (1, Rp)      f32 first-layer bias  (padding lanes = 0)
    w_o1_ref: (1, Rp)      f32 second-layer weight row (padding lanes = 0)
    acc_ref:  (TB, Rp)     f32 output block, resident across the token axis
    """
    t = pl.program_id(1)

    @pl.when(t == 0)
    def _init():
        acc_ref[...] = jnp.zeros_like(acc_ref)

    TB, TN, C = x_ref.shape
    # Fuse batch and tokens into the MXU M dimension.
    x2 = x_ref[...].reshape(TB * TN, C)                       # (TB*TN, C)
    s = jnp.dot(x2, w_co_ref[...],
                preferred_element_type=jnp.float32)           # (TB*TN, Rp) f32 accum
    o = jnp.tanh(s + b_co_ref[...])                           # f32 tanh (EUP)
    # Second Linear as a VPU elementwise multiply (no width-1 matmul).
    e = o * w_o1_ref[...]                                     # (TB*TN, Rp)
    # Sublane reduction over this token tile (XLU); lane reduction over Rp is
    # deferred to the wrapper so the stored block stays lane-dense.
    acc_ref[...] += jnp.sum(e.reshape(TB, TN, e.shape[-1]), axis=1)   # (TB, Rp)


def readout_forward(x, w_co, b_co, w_o1, b_o1, *, block_b=None, block_n=None,
                    use_bf16=True):
    B, N, C = x.shape
    R = w_co.shape[1]
    Rp = ((R + 127) // 128) * 128          # pad readout dim to full 128-lane vregs

    if block_b is None:
        block_b = B
    if block_n is None:
        block_n = N
    assert B % block_b == 0, (B, block_b)
    assert N % block_n == 0, (N, block_n)
    assert block_n == N or block_n % 8 == 0, block_n   # keep reshapes layout-friendly
    G, NT = B // block_b, N // block_n

    compute_dtype = jnp.bfloat16 if use_bf16 else jnp.float32
    x_in = x.astype(compute_dtype)
    w_co_p = jnp.zeros((C, Rp), compute_dtype).at[:, :R].set(w_co.astype(compute_dtype))
    b_co_p = jnp.zeros((1, Rp), jnp.float32).at[:, :R].set(b_co.reshape(1, R))
    w_o1_row = jnp.zeros((1, Rp), jnp.float32).at[:, :R].set(w_o1.reshape(1, R))

    # Explicit VMEM budget: double-buffered x tile + resident weights + output
    # accumulator, with headroom; clamped to stay safe on v7x's 64 MiB VMEM.
    itm = jnp.dtype(compute_dtype).itemsize
    vmem_need = (2 * block_b * block_n * C * itm          # x tile (double buffered)
                 + 2 * (C * Rp * itm + 2 * Rp * 4)        # weights / bias rows
                 + 2 * block_b * Rp * 4                   # output accumulator
                 + (1 << 20))                             # compiler scratch headroom
    vmem_limit = int(min(max(vmem_need, 16 * 1024 * 1024), 48 * 1024 * 1024))

    acc = pl.pallas_call(
        readout_kernel,
        out_shape=jax.ShapeDtypeStruct((G, block_b, Rp), jnp.float32),
        grid=(G, NT),
        in_specs=[
            pl.BlockSpec((block_b, block_n, C), lambda g, t: (g, t, 0)),  # x tile
            pl.BlockSpec((C, Rp), lambda g, t: (0, 0)),                   # w_co (resident)
            pl.BlockSpec((1, Rp), lambda g, t: (0, 0)),                   # b_co
            pl.BlockSpec((1, Rp), lambda g, t: (0, 0)),                   # w_o1 row
        ],
        out_specs=pl.BlockSpec((None, block_b, Rp), lambda g, t: (g, 0, 0)),
        compiler_params=pltpu.CompilerParams(
            dimension_semantics=("parallel", "arbitrary"),
            vmem_limit_bytes=vmem_limit,
        ),
    )(x_in, w_co_p, b_co_p, w_o1_row)

    # Finish outside the kernel: lane-reduce the lane-dense (B, Rp) partials
    # and fold the second-layer bias (summed over N tokens) as N * b_o1.
    energy = jnp.sum(acc.reshape(B, Rp), axis=-1, keepdims=True)
    return energy + jnp.float32(N) * b_o1.reshape(1, 1)


def init_params(key, c_dim, readout_dim):
    """Deterministic init mimicking nn.Linear's U(-1/sqrt(fan_in), 1/sqrt(fan_in))."""
    k1, k2, k3, k4 = jax.random.split(key, 4)
    lim_co = 1.0 / jnp.sqrt(c_dim)
    lim_o1 = 1.0 / jnp.sqrt(readout_dim)
    # stored as (in, out) == transpose of torch.nn.Linear.weight
    w_co = jax.random.uniform(k1, (c_dim, readout_dim), jnp.float32, -lim_co, lim_co)
    b_co = jax.random.uniform(k2, (1, readout_dim), jnp.float32, -lim_co, lim_co)
    w_o1 = jax.random.uniform(k3, (readout_dim, 1), jnp.float32, -lim_o1, lim_o1)
    b_o1 = jax.random.uniform(k4, (1, 1), jnp.float32, -lim_o1, lim_o1)
    return w_co, b_co, w_o1, b_o1


def readout_reference(x, w_co, b_co, w_o1, b_o1, cast_dtype=None):
    if cast_dtype is not None:
        x = x.astype(cast_dtype).astype(jnp.float32)
        w_co = w_co.astype(cast_dtype).astype(jnp.float32)
    o = jnp.tanh(jnp.einsum("bnc,cr->bnr", x, w_co,
                            precision=jax.lax.Precision.HIGHEST) + b_co)
    e = jnp.einsum("bnr,ro->bno", o, w_o1,
                   precision=jax.lax.Precision.HIGHEST) + b_o1
    return jnp.sum(e, axis=1)  # [B, 1]


if __name__ == "__main__":
    B, N, C_DIM, READOUT_DIM = 8, 16, 32, 32

    key = jax.random.PRNGKey(0)
    kx, kp = jax.random.split(key)
    x = jax.random.normal(kx, (B, N, C_DIM), dtype=jnp.float32)
    w_co, b_co, w_o1, b_o1 = init_params(kp, C_DIM, READOUT_DIM)

    # grid = (B//4, N//8) = (2, 2): exercises the "parallel" batch-group axis
    # and the "arbitrary" token-reduction axis with the resident accumulator.
    out = readout_forward(x, w_co, b_co, w_o1, b_o1,
                          block_b=4, block_n=8, use_bf16=True)
    out = jax.block_until_ready(out)

    ref_f32 = readout_reference(x, w_co, b_co, w_o1, b_o1)
    ref_matched = readout_reference(x, w_co, b_co, w_o1, b_o1,
                                    cast_dtype=jnp.bfloat16)

    assert out.shape == (B, 1), out.shape
    # Tight check against a reference using the same bf16-rounded inputs.
    assert jnp.allclose(out, ref_matched, atol=2e-3, rtol=2e-3), (out, ref_matched)
    # Loose check against the pure-f32 reference (bf16 cast shifts results slightly).
    assert jnp.allclose(out, ref_f32, atol=5e-2, rtol=5e-2), (out, ref_f32)

    print("KERNEL_OK")
</pallas_src>

<mosaic_0001>
module attributes {stable_mosaic.version = 11 : i64} {
  func.func @readout_kernel(%arg0: i32, %arg1: i32, %arg2: memref<4x8x32xbf16, #tpu.memory_space<vmem>>, %arg3: memref<32x128xbf16, #tpu.memory_space<vmem>>, %arg4: memref<1x128xf32, #tpu.memory_space<vmem>>, %arg5: memref<1x128xf32, #tpu.memory_space<vmem>>, %arg6: memref<1x4x128xf32, #tpu.memory_space<vmem>>) attributes {dimension_semantics = [#tpu.dimension_semantics<parallel>, #tpu.dimension_semantics<arbitrary>], iteration_bounds = array<i64: 2, 2>, scalar_prefetch = 0 : i64, scratch_operands = 0 : i64, tpu.core_type = #tpu.core_type<tc>, window_params = [{transform_indices = @transform_0, window_bounds = array<i64: 4, 8, 32>}, {pipeline_mode = #tpu.pipeline_mode<synchronous>, transform_indices = @transform_1, window_bounds = array<i64: 32, 128>}, {pipeline_mode = #tpu.pipeline_mode<synchronous>, transform_indices = @transform_2, window_bounds = array<i64: 1, 128>}, {pipeline_mode = #tpu.pipeline_mode<synchronous>, transform_indices = @transform_3, window_bounds = array<i64: 1, 128>}, {transform_indices = @transform_4, window_bounds = array<i64: 1, 4, 128>}]} {
    %c0_i32 = arith.constant 0 : i32
    %0 = arith.cmpi eq, %arg1, %c0_i32 : i32
    %1 = arith.extui %0 : i1 to i32
    %c0_i32_0 = arith.constant 0 : i32
    %2 = arith.cmpi ne, %1, %c0_i32_0 : i32
    scf.if %2 {
      %cst_16 = arith.constant 0.000000e+00 : f32
      %22 = vector.broadcast %cst_16 : f32 to vector<4x128xf32>
      %c0_17 = arith.constant 0 : index
      %c0_18 = arith.constant 0 : index
      %c0_19 = arith.constant 0 : index
      %23 = vector.load %arg6[%c0_17, %c0_18, %c0_19] : memref<1x4x128xf32, #tpu.memory_space<vmem>>, vector<1x4x128xf32>
      %24 = vector.shape_cast %23 : vector<1x4x128xf32> to vector<4x128xf32>
      %25 = vector.shape_cast %22 : vector<4x128xf32> to vector<1x4x128xf32>
      tpu.vector_store %arg6[%c0_17, %c0_18, %c0_19], %25 {strides = array<i32>} : memref<1x4x128xf32, #tpu.memory_space<vmem>>, vector<1x4x128xf32>,
    } else {
    }
    %c0 = arith.constant 0 : index
    %c0_1 = arith.constant 0 : index
    %c0_2 = arith.constant 0 : index
    %3 = vector.load %arg2[%c0, %c0_1, %c0_2] : memref<4x8x32xbf16, #tpu.memory_space<vmem>>, vector<4x8x32xbf16>
    %4 = vector.shape_cast %3 : vector<4x8x32xbf16> to vector<32x32xbf16>
    %c0_3 = arith.constant 0 : index
    %c0_4 = arith.constant 0 : index
    %5 = vector.load %arg3[%c0_3, %c0_4] : memref<32x128xbf16, #tpu.memory_space<vmem>>, vector<32x128xbf16>
    %cst = arith.constant dense<0.000000e+00> : vector<32x128xf32>
    %6 = tpu.matmul %4, %5, %cst {dimension_numbers = #tpu.dot_dimension_numbers<[1], [0], [0], [1], [0, 0, 1, 1], [], []>} : vector<32x32xbf16>, vector<32x128xbf16>, vector<32x128xf32> -> vector<32x128xf32>
    %c0_5 = arith.constant 0 : index
    %c0_6 = arith.constant 0 : index
    %7 = vector.load %arg4[%c0_5, %c0_6] : memref<1x128xf32, #tpu.memory_space<vmem>>, vector<1x128xf32>
    %8 = vector.broadcast %7 : vector<1x128xf32> to vector<32x128xf32>
    %9 = arith.addf %6, %8 : vector<32x128xf32>
    %10 = math.tanh %9 : vector<32x128xf32>
    %c0_7 = arith.constant 0 : index
    %c0_8 = arith.constant 0 : index
    %11 = vector.load %arg5[%c0_7, %c0_8] : memref<1x128xf32, #tpu.memory_space<vmem>>, vector<1x128xf32>
    %12 = vector.broadcast %11 : vector<1x128xf32> to vector<32x128xf32>
    %13 = arith.mulf %10, %12 : vector<32x128xf32>
    %c0_9 = arith.constant 0 : index
    %c0_10 = arith.constant 0 : index
    %c0_11 = arith.constant 0 : index
    %14 = vector.load %arg6[%c0_9, %c0_10, %c0_11] : memref<1x4x128xf32, #tpu.memory_space<vmem>>, vector<1x4x128xf32>
    %15 = vector.shape_cast %14 : vector<1x4x128xf32> to vector<4x128xf32>
    %16 = vector.shape_cast %13 : vector<32x128xf32> to vector<4x8x128xf32>
    %cst_12 = arith.constant dense<0.000000e+00> : vector<4x128xf32>
    %17 = vector.multi_reduction <add>, %16, %cst_12 [1] : vector<4x8x128xf32> to vector<4x128xf32>
    %18 = arith.addf %15, %17 : vector<4x128xf32>
    %c0_13 = arith.constant 0 : index
    %c0_14 = arith.constant 0 : index
    %c0_15 = arith.constant 0 : index
    %19 = vector.load %arg6[%c0_13, %c0_14, %c0_15] : memref<1x4x128xf32, #tpu.memory_space<vmem>>, vector<1x4x128xf32>
    %20 = vector.shape_cast %19 : vector<1x4x128xf32> to vector<4x128xf32>
    %21 = vector.shape_cast %18 : vector<4x128xf32> to vector<1x4x128xf32>
    tpu.vector_store %arg6[%c0_13, %c0_14, %c0_15], %21 {strides = array<i32>} : memref<1x4x128xf32, #tpu.memory_space<vmem>>, vector<1x4x128xf32>,
    return
  }
  func.func @transform_0(%arg0: i32, %arg1: i32) -> (i32, i32, i32) {
    %c0_i32 = arith.constant 0 : i32
    %c0_i32_0 = arith.constant 0 : i32
    return %arg0, %arg1, %c0_i32 : i32, i32, i32
  }
  func.func @transform_1(%arg0: i32, %arg1: i32) -> (i32, i32) {
    %c0_i32 = arith.constant 0 : i32
    %c0_i32_0 = arith.constant 0 : i32
    %c0_i32_1 = arith.constant 0 : i32
    return %c0_i32, %c0_i32_0 : i32, i32
  }
  func.func @transform_2(%arg0: i32, %arg1: i32) -> (i32, i32) {
    %c0_i32 = arith.constant 0 : i32
    %c0_i32_0 = arith.constant 0 : i32
    %c0_i32_1 = arith.constant 0 : i32
    return %c0_i32, %c0_i32_0 : i32, i32
  }
  func.func @transform_3(%arg0: i32, %arg1: i32) -> (i32, i32) {
    %c0_i32 = arith.constant 0 : i32
    %c0_i32_0 = arith.constant 0 : i32
    %c0_i32_1 = arith.constant 0 : i32
    return %c0_i32, %c0_i32_0 : i32, i32
  }
  func.func @transform_4(%arg0: i32, %arg1: i32) -> (i32, i32, i32) {
    %c0_i32 = arith.constant 0 : i32
    %c0_i32_0 = arith.constant 0 : i32
    %c0_i32_1 = arith.constant 0 : i32
    return %arg0, %c0_i32, %c0_i32_0 : i32, i32, i32
  }
}

</mosaic_0001>

<llo_original>
// kernel: tpu_custom_call.1
$region0: #{tpu_custom_call.1}
  #allocation0 [shape = 'u32[]', space=smem, size = 0x4, offset = 0x4, fixed_abs, tag = 'smem constant byte address 0x4 - core index']
  #allocation1 [shape = 'u32[144,128]{1,0:T(1,128)}', space=vmem, size = 0x12000, scoped, tag = 'internal scratch']
  %s0 = inlined_call_operand.hbm [shape: bf16[8,16,32], index: 0, kind: input, shape index: {}]
  %s1 = inlined_call_operand.hbm [shape: bf16[32,128], index: 1, kind: input, shape index: {}]
  %s2 = inlined_call_operand.vmem [shape: f32[1,128], index: 2, kind: input, shape index: {}]
  %s3 = inlined_call_operand.vmem [shape: f32[1,128], index: 3, kind: input, shape index: {}]
  %s4 = inlined_call_operand.hbm [shape: f32[2,4,128], index: 4, kind: output, shape index: {}]
  %s5 = sld [smem:[#allocation0]]
  $region61: #{tpu_custom_call.1} parent=0
    _
  %s7 = ssub.s32 1, %s5
  %s8 = scalar_select 0, %s7, %s5
  $region1: #{tpu_custom_call.1} parent=0
    #allocation2 [shape = 'u8[16384]{0}', space=vmem, size = 0x4000, scoped, tag = 'input window, operand 0']
    #allocation3 [shape = 's32[2]{0}', space=sflag, size = 0x8, scoped, tag = 'scoped memory for tpu_custom_call.1']
    #allocation4 [shape = 's32[2]{0}', space=sflag, size = 0x8, scoped, tag = 'scoped memory for tpu_custom_call.1']
    #allocation5 [shape = 'u8[8192]{0}', space=vmem, size = 0x2000, scoped, tag = 'input window, operand 1, single buffered']
    #allocation6 [shape = 's32[1]{0}', space=sflag, size = 0x4, scoped, tag = 'scoped memory for tpu_custom_call.1']
    #allocation7 [shape = 'u8[4096]{0}', space=vmem, size = 0x1000, scoped, tag = 'output window, operand 0']
    %9 = vsyncpa [#allocation3], 0
    %s10 = scalar_lea.sflag [#allocation3], 1
    %11 = vsyncpa %s10, 0
    %12 = vsyncpa [#allocation6], 0
    %13 = vsyncpa [#allocation4], 0
    %s14 = scalar_lea.sflag [#allocation4], 1
    %15 = vsyncpa %s14, 0
    loop: start=0, step=1, limit=6
    $region2: #{tpu_custom_call.1} parent=1 // loop_pre_header
      _
    $region3: #{tpu_custom_call.1} parent=1 // loop_header
      %s17 = sphi 0, %s21
      %p18 = scmp.ge.s32.totalorder %s17, 6
      %s24 = sphi 0, %s36
      %s25 = sphi 0, %s32
      %s26 = sphi 0, %s24
      %s27 = sphi 0, %s25
      %s28 = sphi 0, %s26
      %s29 = sphi 0, %s27
      %s41 = sphi 0, %s43
      %s44 = sphi 0, %s41
      %s45 = sphi 0, %s44
      %s61 = sphi 0, %s45
      %s65 = sphi 0, %s65
      %s67 = sphi 0, %s65
      %s68 = sphi 0, %s67
      %s82 = sphi 0, %s68
      %s86 = sphi 0, %s86
      %s88 = sphi 0, %s86
      %s89 = sphi 0, %s88
      %s103 = sphi 0, %s89
      %s107 = sphi 0, %s107
      %s109 = sphi 0, %s107
      %s110 = sphi 0, %s109
      %s124 = sphi 0, %s110
      %s130 = sphi 0, %s132
      %s133 = sphi 0, %s130
      %s134 = sphi 0, %s133
      %s150 = sphi 0, %s134
    $region4: #{tpu_custom_call.1} parent=1 // loop_header_branch
      %20 = sbr.rel (%p18) target = $region8
    $region5: #{tpu_custom_call.1} parent=1 // loop_body
      %s22 = ssub.s32 %s17, 1
      %s23 = ssub.s32 %s17, 2
      %s30 = sadd.s32 1, %s25
      %p31 = scmp.ge.s32.totalorder %s30, 2
      %s32 = scalar_select %p31, 0, %s30
      %s33 = sadd.s32 1, %s24
      %s34 = scalar_select %p31, %s33, %s24
      %p35 = scmp.ge.s32.totalorder %s34, 2
      %s36 = scalar_select %p35, 0, %s34
      %s37 = ssub.s32 %s24, %s36
      %s38 = ssub.s32 %s25, %s32
      %s39 = sor.u32 %s37, %s38
      %p40 = scmp.eq.s32.totalorder %s39, 0
      %s42 = sadd.s32 %s41, 1
      %s43 = scalar_select %p40, %s41, %s42
      %p46 = pneg %p40
      %p47 = scmp.eq.s32.totalorder %s17, 3
      %p48 = por %p46, %p47
      %p49 = scmp.ne.s32.totalorder %s41, %s44
      %p50 = scmp.eq.s32.totalorder %s17, 0
      %p51 = por %p49, %p50
      %p52 = scmp.ne.s32.totalorder %s41, %s44
      %p53 = scmp.eq.s32.totalorder %s22, 3
      %p54 = por %p52, %p53
      %p55 = scmp.ne.s32.totalorder %s44, %s45
      %p56 = scmp.eq.s32.totalorder %s22, 0
      %p57 = por %p55, %p56
      %p58 = scmp.ne.s32.totalorder %s44, %s45
      %p59 = scmp.eq.s32.totalorder %s23, 3
      %p60 = por %p58, %p59
      %p62 = scmp.ne.s32.totalorder %s45, %s61
      %p63 = scmp.eq.s32.totalorder %s23, 0
      %p64 = por %p62, %p63
      %s66 = sadd.s32 %s65, 1
      %p69 = scmp.eq.s32.totalorder %s17, 3
      %p70 = scmp.ne.s32.totalorder %s65, %s67
      %p71 = scmp.eq.s32.totalorder %s17, 0
      %p72 = por %p70, %p71
      %p73 = scmp.ne.s32.totalorder %s65, %s67
      %p74 = scmp.eq.s32.totalorder %s22, 3
      %p75 = por %p73, %p74
      %p76 = scmp.ne.s32.totalorder %s67, %s68
      %p77 = scmp.eq.s32.totalorder %s22, 0
      %p78 = por %p76, %p77
      %p79 = scmp.ne.s32.totalorder %s67, %s68
      %p80 = scmp.eq.s32.totalorder %s23, 3
      %p81 = por %p79, %p80
      %p83 = scmp.ne.s32.totalorder %s68, %s82
      %p84 = scmp.eq.s32.totalorder %s23, 0
      %p85 = por %p83, %p84
      %s87 = sadd.s32 %s86, 1
      %p90 = scmp.eq.s32.totalorder %s17, 3
      %p91 = scmp.ne.s32.totalorder %s86, %s88
      %p92 = scmp.eq.s32.totalorder %s17, 0
      %p93 = por %p91, %p92
      %p94 = scmp.ne.s32.totalorder %s86, %s88
      %p95 = scmp.eq.s32.totalorder %s22, 3
      %p96 = por %p94, %p95
      %p97 = scmp.ne.s32.totalorder %s88, %s89
      %p98 = scmp.eq.s32.totalorder %s22, 0
      %p99 = por %p97, %p98
      %p100 = scmp.ne.s32.totalorder %s88, %s89
      %p101 = scmp.eq.s32.totalorder %s23, 3
      %p102 = por %p100, %p101
      %p104 = scmp.ne.s32.totalorder %s89, %s103
      %p105 = scmp.eq.s32.totalorder %s23, 0
      %p106 = por %p104, %p105
      %s108 = sadd.s32 %s107, 1
      %p111 = scmp.eq.s32.totalorder %s17, 3
      %p112 = scmp.ne.s32.totalorder %s107, %s109
      %p113 = scmp.eq.s32.totalorder %s17, 0
      %p114 = por %p112, %p113
      %p115 = scmp.ne.s32.totalorder %s107, %s109
      %p116 = scmp.eq.s32.totalorder %s22, 3
      %p117 = por %p115, %p116
      %p118 = scmp.ne.s32.totalorder %s109, %s110
      %p119 = scmp.eq.s32.totalorder %s22, 0
      %p120 = por %p118, %p119
      %p121 = scmp.ne.s32.totalorder %s109, %s110
      %p122 = scmp.eq.s32.totalorder %s23, 3
      %p123 = por %p121, %p122
      %p125 = scmp.ne.s32.totalorder %s110, %s124
      %p126 = scmp.eq.s32.totalorder %s23, 0
      %p127 = por %p125, %p126
      %s128 = ssub.s32 %s24, %s36
      %p129 = scmp.eq.s32.totalorder %s128, 0
      %s131 = sadd.s32 %s130, 1
      %s132 = scalar_select %p129, %s130, %s131
      %p135 = pneg %p129
      %p136 = scmp.eq.s32.totalorder %s17, 3
      %p137 = por %p135, %p136
      %p138 = scmp.ne.s32.totalorder %s130, %s133
      %p139 = scmp.eq.s32.totalorder %s17, 0
      %p140 = por %p138, %p139
      %p141 = scmp.ne.s32.totalorder %s130, %s133
      %p142 = scmp.eq.s32.totalorder %s22, 3
      %p143 = por %p141, %p142
      %p144 = scmp.ne.s32.totalorder %s133, %s134
      %p145 = scmp.eq.s32.totalorder %s22, 0
      %p146 = por %p144, %p145
      %p147 = scmp.ne.s32.totalorder %s133, %s134
      %p148 = scmp.eq.s32.totalorder %s23, 3
      %p149 = por %p147, %p148
      %p151 = scmp.ne.s32.totalorder %s134, %s150
      %p152 = scmp.eq.s32.totalorder %s23, 0
      %p153 = por %p151, %p152
      %p154 = scmp.le.s32.totalorder 1, %s17
      %p155 = scmp.lt.s32.totalorder %s17, 5
      %p156 = pnand %p154, %p155
      %p157 = pneg %p156
      // Predicated region
      $region9: #{tpu_custom_call.1} parent=5 // pred_check
        _
      $region10: #{tpu_custom_call.1} parent=5 // pred_check_branch
        %159 = sbr.rel (%p156) target = $region12
      $region11: #{tpu_custom_call.1} parent=5 // pred_region
        %s160 = ssub.s32 %s17, 1
        // Predicated region
        $region13: #{tpu_custom_call.1} parent=11 // pred_check
          %p161 = pneg %p78
        $region14: #{tpu_custom_call.1} parent=11 // pred_check_branch
          %163 = sbr.rel (%p161) target = $region16
        $region15: #{tpu_custom_call.1} parent=11 // pred_region
          %s165 = ssub.s32 256, 256
          %166 = vsyncadd [#allocation6], %s165
          %s167 = sshll.u32 [#allocation5], 4
          %s168 = int_to_ptr.vmem [resolvable:$true] %s167
          %173 = dma.hbm_to_vmem [thread:$0]  %s1, 256, %s168, [#allocation6], 64, 64, 4
        $region16: #{tpu_custom_call.1} parent=11 // pred_fallthru
          _
        // Predicated region
        $region17: #{tpu_custom_call.1} parent=11 // pred_check
          %p174 = pneg %p99
        $region18: #{tpu_custom_call.1} parent=11 // pred_check_branch
          %176 = sbr.rel (%p174) target = $region20
        $region19: #{tpu_custom_call.1} parent=11 // pred_region
          _
        $region20: #{tpu_custom_call.1} parent=11 // pred_fallthru
          _
        // Predicated region
        $region21: #{tpu_custom_call.1} parent=11 // pred_check
          %p177 = pneg %p120
        $region22: #{tpu_custom_call.1} parent=11 // pred_check_branch
          %179 = sbr.rel (%p177) target = $region24
        $region23: #{tpu_custom_call.1} parent=11 // pred_region
          _
        $region24: #{tpu_custom_call.1} parent=11 // pred_fallthru
          _
      $region12: #{tpu_custom_call.1} parent=5 // pred_fallthru
        _
      %p180 = scmp.lt.s32.totalorder %s17, 4
      // Predicated region
      $region25: #{tpu_custom_call.1} parent=5 // pred_check
        %p181 = pneg %p180
      $region26: #{tpu_custom_call.1} parent=5 // pred_check_branch
        %183 = sbr.rel (%p181) target = $region28
      $region27: #{tpu_custom_call.1} parent=5 // pred_region
        // Predicated region
        $region29: #{tpu_custom_call.1} parent=27 // pred_check
          %p184 = pneg %p51
        $region30: #{tpu_custom_call.1} parent=27 // pred_check_branch
          %186 = sbr.rel (%p184) target = $region32
        $region31: #{tpu_custom_call.1} parent=27 // pred_region
          %s187 = sand.u32 %s41, 1
          %s188 = scalar_lea.sflag [#allocation3], %s187
          %s189 = sand.u32 %s41, 1
          %s190 = smul.addr %s189, 16
          %s191 = scalar_lea.vmem [#allocation2], %s190
          %s192 = smul.u32 4, %s24
          %s194 = ssub.s32 256, 256
          %195 = vsyncadd %s188, %s194
          %s196 = smul.addr %s192, 2
          %s197 = sadd.s32 %s25, %s196
          %s198 = smul.addr %s197, 64
          %s199 = scalar_lea.hbm %s0, %s198
          %s200 = sshll.u32 %s191, 4
          %s201 = int_to_ptr.vmem [resolvable:$true] %s200
          %206 = dma.hbm_to_vmem [thread:$0]  %s199, 256, %s201, %s188, 128, 64, 4
        $region32: #{tpu_custom_call.1} parent=27 // pred_fallthru
          _
      $region28: #{tpu_custom_call.1} parent=5 // pred_fallthru
        _
      %p207 = scmp.le.s32.totalorder 1, %s17
      %p208 = scmp.lt.s32.totalorder %s17, 5
      %p209 = pnand %p207, %p208
      %p210 = pneg %p209
      // Predicated region
      $region33: #{tpu_custom_call.1} parent=5 // pred_check
        _
      $region34: #{tpu_custom_call.1} parent=5 // pred_check_branch
        %212 = sbr.rel (%p209) target = $region36
      $region35: #{tpu_custom_call.1} parent=5 // pred_region
        %s213 = ssub.s32 %s17, 1
        %s214 = sand.u32 %s44, 1
        %s215 = scalar_lea.sflag [#allocation3], %s214
        %s216 = sand.u32 %s44, 1
        %s217 = smul.addr %s216, 16
        %s218 = scalar_lea.vmem [#allocation2], %s217
        // Predicated region
        $region37: #{tpu_custom_call.1} parent=35 // pred_check
          %p219 = pneg %p57
        $region38: #{tpu_custom_call.1} parent=35 // pred_check_branch
          %221 = sbr.rel (%p219) target = $region40
        $region39: #{tpu_custom_call.1} parent=35 // pred_region
          %222 = dma.done %s215, 256
        $region40: #{tpu_custom_call.1} parent=35 // pred_fallthru
          _
        // Predicated region
        $region41: #{tpu_custom_call.1} parent=35 // pred_check
          %p223 = pneg %p78
        $region42: #{tpu_custom_call.1} parent=35 // pred_check_branch
          %225 = sbr.rel (%p223) target = $region44
        $region43: #{tpu_custom_call.1} parent=35 // pred_region
          %226 = dma.done [#allocation6], 256
        $region44: #{tpu_custom_call.1} parent=35 // pred_fallthru
          _
        %s227 = sand.u32 %s44, 1
        %s228 = scalar_lea.sflag [#allocation3], %s227
        %s229 = sand.u32 %s44, 1
        %s230 = smul.addr %s229, 16
        %s231 = scalar_lea.vmem [#allocation2], %s230
        %p232 = pneg %p57
        %p233 = pneg %p54
        %p234 = pneg %p78
        %p235 = pneg %p75
        %p236 = pneg %p99
        %p237 = pneg %p96
        %p238 = pneg %p120
        %p239 = pneg %p117
        %p240 = pneg %p146
        %p241 = pneg %p143
        %s242 = sand.u32 %s133, 1
        %s243 = scalar_lea.sflag [#allocation4], %s242
        %s244 = sand.u32 %s133, 1
        %s245 = smul.addr %s244, 4
        %s246 = scalar_lea.vmem [#allocation7], %s245
        %s247 = smul.u32 4, %s26
        %p249 = scmp.eq.s32.totalorder %s27, 0
        // Predicated region
        $region45: #{tpu_custom_call.1} parent=35 // pred_check
          %p250 = pneg %p249
        $region46: #{tpu_custom_call.1} parent=35 // pred_check_branch
          %252 = sbr.rel (%p250) target = $region48
        $region47: #{tpu_custom_call.1} parent=35 // pred_region
          %253 = vst [vmem:[%s246] sm:$0xf] 0.0
        $region48: #{tpu_custom_call.1} parent=35 // pred_fallthru
          _
        %v254 = vld [vmem:[%s218] sm:$0xf]
        %v255 = vld [vmem:[%s218 + $0x4] sm:$0xf]
        %v256 = vld [vmem:[%s218 + $0x8] sm:$0xf]
        %v257 = vld [vmem:[%s218 + $0xc] sm:$0xf]
        %v258 = vld [vmem:[#allocation5] sm:$0xf]
        %v259 = vld [vmem:[#allocation5 + $0x4] sm:$0xf]
        %v260 = vld [vmem:[#allocation5 + $0x8] sm:$0xf]
        %v261 = vld [vmem:[#allocation5 + $0xc] sm:$0xf]
        %v262 = vld [vmem:[%s2] sm:$0x1]
        %v264 = vlaneseq
        %v265 = vshrl.u32 %v264, 7
        %v266 = vsub.s32 0, %v265
        %v267 = vrot.slane %v262, %v266
        %v273 = vunpack.c.l.b16 %v254
        %v274 = vunpack.c.l.b16 %v255
        %v275 = vunpack.c.l.b16 %v256
        %v276 = vunpack.c.l.b16 %v257
        %v277 = vpack.c.b16 %v274, %v273
        %v278 = vpack.c.b16 %v276, %v275
        %v283 = vunpack.c.l.b16 %v258
        %v284 = vunpack.c.l.b16 %v259
        %v285 = vunpack.c.l.b16 %v260
        %v286 = vunpack.c.l.b16 %v261
        %v287 = vpack.c.b16 %v284, %v283
        %v288 = vpack.c.b16 %v286, %v285
        %vm291 = vcmask 261120
        %v293 = vsel %vm291, %v277, 0
        %v296 = vsel %vm291, %v278, 0
        %298 = vmatprep.subr.bf16.mxu0 0
        %299 = vmatpush1.bf16.msra.mxu0 %v287
        %300 = vmatprep.subr.bf16.mxu0 0
        %301 = vmatpush1.bf16.msra.mxu0 %v288
        %302 = vmatprep.subr.bf16.mxu0 0
        %303 = vmatpush1.bf16.msra.mxu0 0
        %304 = vmatprep.subr.bf16.mxu0 0
        %305 = vmatpush1.bf16.msra.mxu0 0
        %306 = vmatprep.subr.bf16.mxu0 0
        %307 = vmatpush1.bf16.msra.mxu0 0
        %308 = vmatprep.subr.bf16.mxu0 0
        %309 = vmatpush1.bf16.msra.mxu0 0
        %310 = vmatprep.subr.bf16.mxu0 0
        %311 = vmatpush1.bf16.msra.mxu0 0
        %312 = vmatprep.subr.bf16.mxu0 0
        %313 = vmatpush1.bf16.msra.mxu0 0
        %314 = vmatprep.subr.bf16.mxu0 0
        %315 = vmatpush1.bf16.msra.mxu0 0
        %316 = vmatprep.subr.bf16.mxu0 0
        %317 = vmatpush1.bf16.msra.mxu0 0
        %318 = vmatprep.subr.bf16.mxu0 0
        %319 = vmatpush1.bf16.msra.mxu0 0
        %320 = vmatprep.subr.bf16.mxu0 0
        %321 = vmatpush1.bf16.msra.mxu0 0
        %322 = vmatprep.subr.bf16.mxu0 0
        %323 = vmatpush1.bf16.msra.mxu0 0
        %324 = vmatprep.subr.bf16.mxu0 0
        %325 = vmatpush1.bf16.msra.mxu0 0
        %326 = vmatprep.subr.bf16.mxu0 0
        %327 = vmatpush1.bf16.msra.mxu0 0
        %328 = vmatprep.subr.bf16.mxu0 0
        %329 = vmatpush1.bf16.msra.mxu0 0
        %330 = vmatprep.mubr.bf16.mxu0 0
        %331 = vmatmul.mubr.bf16.gmra.mrb[0].mxu0 %v293
        %v332 = vpop.f32.mrb[0].mxu0
        %v333 = vadd.f32 %v267, %v332
        %v334 = vpop.f32.mrb[0].mxu0
        %v335 = vpop.f32.mrb[0].mxu0
        %v336 = vadd.f32 %v267, %v335
        %v337 = vpop.f32.mrb[0].mxu0
        %338 = vmatprep.mubr.bf16.mxu0 0
        %339 = vmatmul.mubr.bf16.gmra.mrb[0].mxu0 %v296
        %v340 = vpop.f32.mrb[0].mxu0
        %v341 = vadd.f32 %v267, %v340
        %v342 = vpop.f32.mrb[0].mxu0
        %v343 = vpop.f32.mrb[0].mxu0
        %v344 = vadd.f32 %v267, %v343
        %v345 = vpop.f32.mrb[0].mxu0
        %346 = vdwg.mxu0
        %v347 = vtanh.pop %v333
        %v348 = vtanh.pop %v336
        %v349 = vtanh.pop %v341
        %v350 = vtanh.pop %v344
        %v351 = vld [vmem:[%s3] sm:$0x1]
        %v353 = vlaneseq
        %v354 = vshrl.u32 %v353, 7
        %v355 = vsub.s32 0, %v354
        %v356 = vrot.slane %v351, %v355
        %v358 = vmul.f32 %v347, %v356
        %v359 = vmul.f32 %v348, %v356
        %v360 = vmul.f32 %v349, %v356
        %v361 = vmul.f32 %v350, %v356
        %v362 = vld [vmem:[%s246] sm:$0xf]
        %v363 = vrot.slane %v358, 4
        %v364 = vadd.f32 %v358, %v363
        %v365 = vrot.slane %v364, 2
        %v366 = vadd.f32 %v364, %v365
        %v367 = vrot.slane %v366, 1
        %v368 = vadd.f32 %v366, %v367
        %v369 = vrot.slane %v359, 4
        %v370 = vadd.f32 %v359, %v369
        %v371 = vrot.slane %v370, 2
        %v372 = vadd.f32 %v370, %v371
        %v373 = vrot.slane %v372, 1
        %v374 = vadd.f32 %v372, %v373
        %v375 = vrot.slane %v360, 4
        %v376 = vadd.f32 %v360, %v375
        %v377 = vrot.slane %v376, 2
        %v378 = vadd.f32 %v376, %v377
        %v379 = vrot.slane %v378, 1
        %v380 = vadd.f32 %v378, %v379
        %v381 = vrot.slane %v361, 4
        %v382 = vadd.f32 %v361, %v381
        %v383 = vrot.slane %v382, 2
        %v384 = vadd.f32 %v382, %v383
        %v385 = vrot.slane %v384, 1
        %v386 = vadd.f32 %v384, %v385
        %vm391 = vcmask 1041409
        %v392 = vsel %vm391, %v374, %v368
        %vm393 = vcmask 1042434
        %v394 = vsel %vm393, %v380, %v392
        %vm395 = vcmask 1043459
        %v396 = vsel %vm395, %v386, %v394
        %v398 = vadd.f32 %v362, %v396
        %399 = vst [vmem:[%s246] sm:$0xf] %v398
        %s400 = sand.u32 %s133, 1
        %s401 = scalar_lea.sflag [#allocation4], %s400
        %s402 = sand.u32 %s133, 1
        %s403 = smul.addr %s402, 4
        %s404 = scalar_lea.vmem [#allocation7], %s403
        // Predicated region
        $region49: #{tpu_custom_call.1} parent=35 // pred_check
          %p405 = pneg %p143
        $region50: #{tpu_custom_call.1} parent=35 // pred_check_branch
          %407 = sbr.rel (%p405) target = $region52
        $region51: #{tpu_custom_call.1} parent=35 // pred_region
          %s409 = ssub.s32 64, 64
          %410 = vsyncadd %s401, %s409
          %s411 = smul.addr %s26, 64
          %s412 = scalar_lea.hbm %s4, %s411
          %s414 = sshll.u32 %s404, 4
          %s415 = int_to_ptr.vmem [resolvable:$true] %s414
          %417 = dma.vmem_to_hbm [thread:$0]  %s415, 64, %s412, %s401
        $region52: #{tpu_custom_call.1} parent=35 // pred_fallthru
          _
      $region36: #{tpu_custom_call.1} parent=5 // pred_fallthru
        _
      %p418 = scmp.le.s32.totalorder 2, %s17
      // Predicated region
      $region53: #{tpu_custom_call.1} parent=5 // pred_check
        %p419 = pneg %p418
      $region54: #{tpu_custom_call.1} parent=5 // pred_check_branch
        %421 = sbr.rel (%p419) target = $region56
      $region55: #{tpu_custom_call.1} parent=5 // pred_region
        %s422 = ssub.s32 %s17, 2
        // Predicated region
        $region57: #{tpu_custom_call.1} parent=55 // pred_check
          %p423 = pneg %p149
        $region58: #{tpu_custom_call.1} parent=55 // pred_check_branch
          %425 = sbr.rel (%p423) target = $region60
        $region59: #{tpu_custom_call.1} parent=55 // pred_region
          %s426 = sand.u32 %s134, 1
          %s427 = scalar_lea.sflag [#allocation4], %s426
          %s428 = sand.u32 %s134, 1
          %s429 = smul.addr %s428, 4
          %s430 = scalar_lea.vmem [#allocation7], %s429
          %431 = dma.done %s427, 64
        $region60: #{tpu_custom_call.1} parent=55 // pred_fallthru
          _
      $region56: #{tpu_custom_call.1} parent=5 // pred_fallthru
        _
    $region6: #{tpu_custom_call.1} parent=1 // loop_footer
      %s21 = sadd.s32 1, %s17
    $region7: #{tpu_custom_call.1} parent=1 // loop_footer_branch
      %16 = sbr.rel target = $region3
    $region8: #{tpu_custom_call.1} parent=1 // loop_exit
      _
    %432 = vsyncpa [#allocation3], 1
    %s433 = scalar_lea.sflag [#allocation3], 1
    %434 = vsyncpa %s433, 1
    %435 = vsyncpa [#allocation6], 1
    %436 = vsyncpa [#allocation4], 1
    %s437 = scalar_lea.sflag [#allocation4], 1
    %438 = vsyncpa %s437, 1

</llo_original>
